<compile_context>
chip_gen: v7x
topology: tpu7x:2x2x1
jax: 0.10.0
libtpu: 0.0.40
codegen_flags: <defaults>
</compile_context>

<pallas_src>
import math

import jax
import jax.numpy as jnp
from jax.experimental import pallas as pl
from jax.experimental.pallas import tpu as pltpu


# ---------------------------------------------------------------------------
# lgamma for arg > 0: Lanczos (g=7, n=9) with the partial-fraction sum
# c0 + sum_i c_i/(arg+i-1) expressed as a rational P(arg)/Q(arg).
# P coefficients are precomputed in f64 at import time (scaled by 2^-32 for
# f32 overflow headroom); Q is evaluated structurally in-kernel.
# ---------------------------------------------------------------------------
_LANCZOS_G = 7.0
_LANCZOS_COEFS = (
    0.99999999999980993, 676.5203681218851, -1259.1392167224028,
    771.32342877765313, -176.61502916214059, 12.507343278686905,
    -0.13857109526572012, 9.9843695780195716e-6, 1.5056327351493116e-7,
)
_HALF_LOG_2PI = 0.5 * math.log(2.0 * math.pi)
_LANCZOS_SCALE = 2.0 ** -32            # shared scale on P and Q (ratio unchanged)
_BASE_CONST = _HALF_LOG_2PI - 7.5      # folded constants of b1 + b2 - b3


def _poly_mul_linear(p, root):
    """Multiply ascending-coefficient polynomial p(y) by (y + root)."""
    out = [0.0] * (len(p) + 1)
    for k, c in enumerate(p):
        out[k] += c * root
        out[k + 1] += c
    return out


def _build_lgamma_numerator():
    # A(arg) = c0 + sum_{i=1..8} c_i/(arg + i - 1) = P(arg)/Q(arg),
    # Q(arg) = prod_{j=0..7}(arg + j).  Working in `arg` (not arg-1) avoids
    # cancellation for tiny arg (disp == 0).  Coefficients pre-scaled by
    # _LANCZOS_SCALE; the same scale is applied to Q in-kernel so the ratio is
    # unchanged while f32 overflow headroom extends to arg ~ 1e6.
    q = [1.0]
    for j in range(8):
        q = _poly_mul_linear(q, float(j))
    p = [_LANCZOS_COEFS[0] * c for c in q]
    for i in range(1, 9):
        qi = [1.0]
        for j in range(8):
            if j != i - 1:
                qi = _poly_mul_linear(qi, float(j))
        for k, c in enumerate(qi):
            p[k] += _LANCZOS_COEFS[i] * c
    return tuple(c * _LANCZOS_SCALE for c in p)


_LGAMMA_P = _build_lgamma_numerator()


def _horner(y, coeffs):
    acc = coeffs[-1]
    for c in coeffs[-2::-1]:
        acc = acc * y + c
    return acc


def _lanczos_pq(arg):
    """Scaled (P, Q) with A(arg) = P/Q; lgamma(arg) ~= base(arg) + log(A)."""
    p = _horner(arg, _LGAMMA_P)
    # Q(arg) = prod_{j=0..7}(arg+j) via paired products (9 VALU ops vs 16 for
    # Horner).  Scale applied early to keep ~1e6 arg overflow headroom.
    u = arg * (arg + 7.0)
    q = ((u * _LANCZOS_SCALE) * (u + 6.0)) * ((u + 10.0) * (u + 12.0))
    return p, q


def _reduce_to_8x128(v, tile_n, tile_g):
    """Sum a (tile_n, tile_g) tile to (8, 128) with lane/sublane-aligned slice
    adds (pure vreg VALU adds; no VMEM round-trip, no relayout)."""
    part = v[:, 0:128]
    for c in range(1, tile_g // 128):
        part = part + v[:, c * 128:(c + 1) * 128]
    red = part[0:8, :]
    for r in range(1, tile_n // 8):
        red = red + part[r * 8:(r + 1) * 8, :]
    return red


# ---------------------------------------------------------------------------
# Kernel factory
# ---------------------------------------------------------------------------
def _make_zinb_kernel(n_rows, n_cols, tile_n, tile_g, ridge_lambda,
                      row_masked, col_masked):
    ridge_lambda = float(ridge_lambda)
    eps = 1e-10

    def kernel(sf_ref, x_ref, mean_ref, disp_ref, pi_ref, out_ref, acc_ref):
        i = pl.program_id(0)
        j = pl.program_id(1)

        @pl.when(j == 0)
        def _():
            acc_ref[...] = jnp.zeros(acc_ref.shape, acc_ref.dtype)

        x = x_ref[...]
        mean = mean_ref[...] * sf_ref[...]            # (tn, tg) * (tn, 1)
        disp = disp_ref[...]
        pi = pi_ref[...]

        disp_e = disp + eps
        ld = jnp.log(disp_e)                          # log(disp + eps)
        lm = jnp.log(mean + eps)                      # log(mean + eps)
        ldm = jnp.log(disp_e + mean)                  # log(disp + mean + eps)

        # t1 = lgamma(disp+eps) + lgamma(x+1) - lgamma(x+disp+eps)
        arg1 = disp_e
        arg2 = x + 1.0
        arg3 = x + disp_e
        p1, q1 = _lanczos_pq(arg1)
        p2, q2 = _lanczos_pq(arg2)
        p3, q3 = _lanczos_pq(arg3)
        # A1*A2/A3 regrouped into O(1)-safe ratios: 3 divides, no overflow.
        ratio = (p1 / q1) * (p2 / p3) * (q3 / q2)

        t1f = arg1 + 6.5
        t2f = x + 7.5
        t3f = arg3 + 6.5
        # b1 + b2 - b3 with constants folded (-t1-t2+t3 == -7.5) and b2-b3
        # combined through log(t2/t3) (well conditioned for large x).
        b_sum = (_BASE_CONST
                 + (disp_e - 0.5) * jnp.log(t1f)
                 + (x + 0.5) * jnp.log(t2f / t3f)
                 - (disp_e - 1.0) * jnp.log(t3f))
        lgamma_term = b_sum + jnp.log(ratio)

        # t2 of the reference:
        #   (disp+x)*log(1+mean/(disp+eps)) + x*(log(disp+eps)-log(mean+eps))
        # == disp*(ldm-ld) + x*(ldm-lm); disp*(ldm-ld) is shared with the
        # zero_nb exponent (pow(disp/(disp+mean+eps), disp) == exp(-d_term),
        # finite for disp == 0, matching torch's pow(0, 0) == 1).
        d_term = disp * (ldm - ld)
        nb_final = lgamma_term + d_term + x * (ldm - lm)
        zero_nb = jnp.exp(-d_term)

        is_zero = x <= 1e-8
        # where() evaluates both branches anyway -> select the log argument
        # first and issue a single EUP log.
        log_arg = jnp.where(is_zero, pi + (1.0 - pi) * zero_nb + eps,
                            1.0 - pi + eps)
        result = jnp.where(is_zero, 0.0, nb_final) - jnp.log(log_arg)
        if ridge_lambda > 0.0:
            result = result + ridge_lambda * (pi * pi)

        def accumulate(res):
            acc_ref[...] += _reduce_to_8x128(res, tile_n, tile_g)

        if row_masked or col_masked:
            # Only edge tiles pay for the iota/compare/select; interior tiles
            # take the unmasked path.
            conds = []
            if row_masked:
                conds.append(i == pl.num_programs(0) - 1)
            if col_masked:
                conds.append(j == pl.num_programs(1) - 1)
            edge = conds[0]
            for c in conds[1:]:
                edge = jnp.logical_or(edge, c)

            @pl.when(edge)
            def _():
                mask = None
                if row_masked:
                    row = (jax.lax.broadcasted_iota(jnp.int32, result.shape, 0)
                           + i * tile_n)
                    mask = row < n_rows
                if col_masked:
                    col = (jax.lax.broadcasted_iota(jnp.int32, result.shape, 1)
                           + j * tile_g)
                    cm = col < n_cols
                    mask = cm if mask is None else jnp.logical_and(mask, cm)
                accumulate(jnp.where(mask, result, 0.0))

            @pl.when(jnp.logical_not(edge))
            def _():
                accumulate(result)
        else:
            accumulate(result)

        @pl.when(j == pl.num_programs(1) - 1)
        def _():
            out_ref[...] = acc_ref[...]

    return kernel


def _round_up(v, m):
    return ((v + m - 1) // m) * m


def _cdiv(a, b):
    return (a + b - 1) // b


def _pick_tile_n(default=256):
    # (512, 1024) tiles on v5e/v6e (128 MiB VMEM); stay at 256 on v7x (64 MiB)
    # so double-buffered tiles leave headroom for compiler scratch.
    try:
        info = pltpu.get_tpu_info()
        cap = getattr(info, "vmem_capacity_bytes", None)
        if cap is not None and cap >= 96 * 1024 * 1024:
            return 512
    except Exception:
        pass
    return default


def zinb_loss(x, mean, disp, pi, scale_factor=1.0, ridge_lambda=0.0, *,
              tile_n=None, tile_g=1024):
    """Scalar ZINB loss matching ZINBLoss.forward.

    x, mean, disp, pi: (N, G); scale_factor: (N,) (or scalar).
    """
    x = jnp.asarray(x, jnp.float32)
    mean = jnp.asarray(mean, jnp.float32)
    disp = jnp.asarray(disp, jnp.float32)
    pi = jnp.asarray(pi, jnp.float32)
    N, G = x.shape

    sf = jnp.asarray(scale_factor, jnp.float32)
    if sf.ndim == 0:
        sf = jnp.full((N,), sf, jnp.float32)
    sf = sf.reshape(N, 1)

    if tile_n is None:
        tile_n = _pick_tile_n()
    assert tile_n % 8 == 0 and tile_g % 128 == 0

    # Tiny-dimension fallback only: pad up to the minimum (8, 128) tile (cheap,
    # rare).  The common ragged case is handled by in-kernel edge masking --
    # no full-array jnp.pad / extra HBM pass.
    pN, pG = max(N, 8), max(G, 128)
    if pN != N or pG != G:
        pad = ((0, pN - N), (0, pG - G))
        x = jnp.pad(x, pad)
        mean = jnp.pad(mean, pad)
        disp = jnp.pad(disp, pad)
        pi = jnp.pad(pi, pad)
        sf = jnp.pad(sf, ((0, pN - N), (0, 0)))

    # Largest (8,128)-aligned tile not exceeding the array; ragged trailing
    # blocks are masked in-kernel.
    tm = min(tile_n, (pN // 8) * 8)
    tg = min(tile_g, (pG // 128) * 128)
    # Guarantee >=2 row tiles where possible so the "parallel" row-tile axis
    # can shard across both TensorCores on v7x.
    if pN >= 16 and _cdiv(pN, tm) == 1:
        tm = _round_up(_cdiv(pN, 2), 8)

    grid = (_cdiv(pN, tm), _cdiv(pG, tg))
    row_masked = (pN % tm != 0) or (pN != N)
    col_masked = (pG % tg != 0) or (pG != G)

    kernel = _make_zinb_kernel(N, G, tm, tg, ridge_lambda,
                               row_masked, col_masked)

    # VMEM: 4 double-buffered (tm, tg) f32 inputs + small accumulator/output.
    block_bytes = tm * tg * 4
    vmem_limit = int(min(100 * 1024 * 1024,
                         2 * 4 * block_bytes + 16 * 1024 * 1024))

    data_spec = pl.BlockSpec((tm, tg), lambda i, j: (i, j))
    partials = pl.pallas_call(
        kernel,
        out_shape=jax.ShapeDtypeStruct((grid[0] * 8, 128), jnp.float32),
        grid_spec=pltpu.PrefetchScalarGridSpec(
            num_scalar_prefetch=0,
            grid=grid,
            in_specs=[
                pl.BlockSpec((tm, 1), lambda i, j: (i, 0)),   # scale_factor
                data_spec, data_spec, data_spec, data_spec,   # x, mean, disp, pi
            ],
            out_specs=pl.BlockSpec((8, 128), lambda i, j: (i, 0)),
            scratch_shapes=[pltpu.VMEM((8, 128), jnp.float32)],
        ),
        compiler_params=pltpu.CompilerParams(
            dimension_semantics=("parallel", "arbitrary"),
            vmem_limit_bytes=vmem_limit,
        ),
    )(sf, x, mean, disp, pi)

    return jnp.sum(partials) / (N * G)


# ---------------------------------------------------------------------------
# Pure-JAX reference (mirrors the PyTorch forward) for a sanity check.
# ---------------------------------------------------------------------------
def zinb_loss_ref(x, mean, disp, pi, scale_factor, ridge_lambda=0.0):
    eps = 1e-10
    mean = mean * scale_factor[:, None]
    lgam = jax.scipy.special.gammaln
    t1 = lgam(disp + eps) + lgam(x + 1.0) - lgam(x + disp + eps)
    t2 = (disp + x) * jnp.log(1.0 + mean / (disp + eps)) + x * (
        jnp.log(disp + eps) - jnp.log(mean + eps))
    nb_final = t1 + t2
    nb_case = nb_final - jnp.log(1.0 - pi + eps)
    zero_nb = jnp.power(disp / (disp + mean + eps), disp)
    zero_case = -jnp.log(pi + (1.0 - pi) * zero_nb + eps)
    result = jnp.where(x <= 1e-8, zero_case, nb_case)
    if ridge_lambda > 0:
        result = result + ridge_lambda * jnp.square(pi)
    return jnp.mean(result)


if __name__ == "__main__":
    def make_inputs(key, n, g):
        k1, k2, k3, k4, k5 = jax.random.split(key, 5)
        x = jnp.floor(jax.random.uniform(k1, (n, g), jnp.float32) * 4.0)
        mean = jnp.exp(jax.random.normal(k2, (n, g), jnp.float32) * 0.5)
        disp = jnp.exp(jax.random.normal(k3, (n, g), jnp.float32) * 0.3) + 0.1
        pi = jax.random.uniform(k4, (n, g), jnp.float32, minval=0.05, maxval=0.95)
        sf = jax.random.uniform(k5, (n,), jnp.float32, minval=0.5, maxval=2.0)
        return x, mean, disp, pi, sf

    # Aligned shape (8 cells x 256 genes), no ridge.
    x, mean, disp, pi, sf = make_inputs(jax.random.PRNGKey(0), 8, 256)
    loss = jax.block_until_ready(zinb_loss(x, mean, disp, pi, sf))
    ref = zinb_loss_ref(x, mean, disp, pi, sf)
    assert bool(jnp.isfinite(loss)), "non-finite loss (aligned case)"
    assert abs(float(loss) - float(ref)) < 2e-3 * max(1.0, abs(float(ref))), (
        float(loss), float(ref))

    # Ragged shape (10 x 200, exercises edge-tile masking) with ridge penalty.
    x, mean, disp, pi, sf = make_inputs(jax.random.PRNGKey(1), 10, 200)
    loss2 = jax.block_until_ready(
        zinb_loss(x, mean, disp, pi, sf, ridge_lambda=0.1))
    ref2 = zinb_loss_ref(x, mean, disp, pi, sf, ridge_lambda=0.1)
    assert bool(jnp.isfinite(loss2)), "non-finite loss (ragged case)"
    assert abs(float(loss2) - float(ref2)) < 2e-3 * max(1.0, abs(float(ref2))), (
        float(loss2), float(ref2))

    print("KERNEL_OK")
</pallas_src>

<mosaic_0001>
module attributes {stable_mosaic.version = 11 : i64} {
  func.func @kernel(%arg0: i32, %arg1: i32, %arg2: memref<8x1xf32, #tpu.memory_space<vmem>>, %arg3: memref<8x256xf32, #tpu.memory_space<vmem>>, %arg4: memref<8x256xf32, #tpu.memory_space<vmem>>, %arg5: memref<8x256xf32, #tpu.memory_space<vmem>>, %arg6: memref<8x256xf32, #tpu.memory_space<vmem>>, %arg7: memref<8x128xf32, #tpu.memory_space<vmem>>, %arg8: memref<8x128xf32, #tpu.memory_space<vmem>>) attributes {dimension_semantics = [#tpu.dimension_semantics<parallel>, #tpu.dimension_semantics<arbitrary>], iteration_bounds = array<i64: 1, 1>, scalar_prefetch = 0 : i64, scratch_operands = 1 : i64, tpu.core_type = #tpu.core_type<tc>, window_params = [{transform_indices = @transform_0, window_bounds = array<i64: 8, 1>}, {transform_indices = @transform_1, window_bounds = array<i64: 8, 256>}, {transform_indices = @transform_2, window_bounds = array<i64: 8, 256>}, {transform_indices = @transform_3, window_bounds = array<i64: 8, 256>}, {transform_indices = @transform_4, window_bounds = array<i64: 8, 256>}, {transform_indices = @transform_5, window_bounds = array<i64: 8, 128>}]} {
    %c0_i32 = arith.constant 0 : i32
    %0 = arith.cmpi eq, %arg1, %c0_i32 : i32
    %1 = arith.extui %0 : i1 to i32
    %c0_i32_0 = arith.constant 0 : i32
    %2 = arith.cmpi ne, %1, %c0_i32_0 : i32
    scf.if %2 {
      %cst_74 = arith.constant 0.000000e+00 : f32
      %203 = vector.broadcast %cst_74 : f32 to vector<8x128xf32>
      %c0_75 = arith.constant 0 : index
      %c0_76 = arith.constant 0 : index
      %204 = vector.load %arg8[%c0_75, %c0_76] : memref<8x128xf32, #tpu.memory_space<vmem>>, vector<8x128xf32>
      tpu.vector_store %arg8[%c0_75, %c0_76], %203 {strides = array<i32>} : memref<8x128xf32, #tpu.memory_space<vmem>>, vector<8x128xf32>,
    } else {
    }
    %c0 = arith.constant 0 : index
    %c0_1 = arith.constant 0 : index
    %3 = vector.load %arg3[%c0, %c0_1] : memref<8x256xf32, #tpu.memory_space<vmem>>, vector<8x256xf32>
    %c0_2 = arith.constant 0 : index
    %c0_3 = arith.constant 0 : index
    %4 = vector.load %arg4[%c0_2, %c0_3] : memref<8x256xf32, #tpu.memory_space<vmem>>, vector<8x256xf32>
    %c0_4 = arith.constant 0 : index
    %c0_5 = arith.constant 0 : index
    %5 = vector.load %arg2[%c0_4, %c0_5] : memref<8x1xf32, #tpu.memory_space<vmem>>, vector<8x1xf32>
    %6 = vector.broadcast %5 : vector<8x1xf32> to vector<8x256xf32>
    %7 = arith.mulf %4, %6 : vector<8x256xf32>
    %c0_6 = arith.constant 0 : index
    %c0_7 = arith.constant 0 : index
    %8 = vector.load %arg5[%c0_6, %c0_7] : memref<8x256xf32, #tpu.memory_space<vmem>>, vector<8x256xf32>
    %c0_8 = arith.constant 0 : index
    %c0_9 = arith.constant 0 : index
    %9 = vector.load %arg6[%c0_8, %c0_9] : memref<8x256xf32, #tpu.memory_space<vmem>>, vector<8x256xf32>
    %cst = arith.constant 1.000000e-10 : f32
    %10 = vector.broadcast %cst : f32 to vector<8x256xf32>
    %11 = arith.addf %8, %10 : vector<8x256xf32>
    %12 = math.log %11 : vector<8x256xf32>
    %cst_10 = arith.constant 1.000000e-10 : f32
    %13 = vector.broadcast %cst_10 : f32 to vector<8x256xf32>
    %14 = arith.addf %7, %13 : vector<8x256xf32>
    %15 = math.log %14 : vector<8x256xf32>
    %16 = arith.addf %11, %7 : vector<8x256xf32>
    %17 = math.log %16 : vector<8x256xf32>
    %cst_11 = arith.constant 1.000000e+00 : f32
    %18 = vector.broadcast %cst_11 : f32 to vector<8x256xf32>
    %19 = arith.addf %3, %18 : vector<8x256xf32>
    %20 = arith.addf %3, %11 : vector<8x256xf32>
    %cst_12 = arith.constant 2.32830644E-10 : f32
    %21 = vector.broadcast %cst_12 : f32 to vector<8x256xf32>
    %22 = arith.mulf %21, %11 : vector<8x256xf32>
    %cst_13 = arith.constant 1.22139072E-8 : f32
    %23 = vector.broadcast %cst_13 : f32 to vector<8x256xf32>
    %24 = arith.addf %22, %23 : vector<8x256xf32>
    %25 = arith.mulf %24, %11 : vector<8x256xf32>
    %cst_14 = arith.constant 2.80289498E-7 : f32
    %26 = vector.broadcast %cst_14 : f32 to vector<8x256xf32>
    %27 = arith.addf %25, %26 : vector<8x256xf32>
    %28 = arith.mulf %27, %11 : vector<8x256xf32>
    %cst_15 = arith.constant 3.67520397E-6 : f32
    %29 = vector.broadcast %cst_15 : f32 to vector<8x256xf32>
    %30 = arith.addf %28, %29 : vector<8x256xf32>
    %31 = arith.mulf %30, %11 : vector<8x256xf32>
    %cst_16 = arith.constant 3.01160053E-5 : f32
    %32 = vector.broadcast %cst_16 : f32 to vector<8x256xf32>
    %33 = arith.addf %31, %32 : vector<8x256xf32>
    %34 = arith.mulf %33, %11 : vector<8x256xf32>
    %cst_17 = arith.constant 1.57926625E-4 : f32
    %35 = vector.broadcast %cst_17 : f32 to vector<8x256xf32>
    %36 = arith.addf %34, %35 : vector<8x256xf32>
    %37 = arith.mulf %36, %11 : vector<8x256xf32>
    %cst_18 = arith.constant 5.17554698E-4 : f32
    %38 = vector.broadcast %cst_18 : f32 to vector<8x256xf32>
    %39 = arith.addf %37, %38 : vector<8x256xf32>
    %40 = arith.mulf %39, %11 : vector<8x256xf32>
    %cst_19 = arith.constant 9.69131477E-4 : f32
    %41 = vector.broadcast %cst_19 : f32 to vector<8x256xf32>
    %42 = arith.addf %40, %41 : vector<8x256xf32>
    %43 = arith.mulf %42, %11 : vector<8x256xf32>
    %cst_20 = arith.constant 7.938740e-04 : f32
    %44 = vector.broadcast %cst_20 : f32 to vector<8x256xf32>
    %45 = arith.addf %43, %44 : vector<8x256xf32>
    %cst_21 = arith.constant 7.000000e+00 : f32
    %46 = vector.broadcast %cst_21 : f32 to vector<8x256xf32>
    %47 = arith.addf %11, %46 : vector<8x256xf32>
    %48 = arith.mulf %11, %47 : vector<8x256xf32>
    %cst_22 = arith.constant 2.32830644E-10 : f32
    %49 = vector.broadcast %cst_22 : f32 to vector<8x256xf32>
    %50 = arith.mulf %48, %49 : vector<8x256xf32>
    %cst_23 = arith.constant 6.000000e+00 : f32
    %51 = vector.broadcast %cst_23 : f32 to vector<8x256xf32>
    %52 = arith.addf %48, %51 : vector<8x256xf32>
    %53 = arith.mulf %50, %52 : vector<8x256xf32>
    %cst_24 = arith.constant 1.000000e+01 : f32
    %54 = vector.broadcast %cst_24 : f32 to vector<8x256xf32>
    %55 = arith.addf %48, %54 : vector<8x256xf32>
    %cst_25 = arith.constant 1.200000e+01 : f32
    %56 = vector.broadcast %cst_25 : f32 to vector<8x256xf32>
    %57 = arith.addf %48, %56 : vector<8x256xf32>
    %58 = arith.mulf %55, %57 : vector<8x256xf32>
    %59 = arith.mulf %53, %58 : vector<8x256xf32>
    %cst_26 = arith.constant 2.32830644E-10 : f32
    %60 = vector.broadcast %cst_26 : f32 to vector<8x256xf32>
    %61 = arith.mulf %60, %19 : vector<8x256xf32>
    %cst_27 = arith.constant 1.22139072E-8 : f32
    %62 = vector.broadcast %cst_27 : f32 to vector<8x256xf32>
    %63 = arith.addf %61, %62 : vector<8x256xf32>
    %64 = arith.mulf %63, %19 : vector<8x256xf32>
    %cst_28 = arith.constant 2.80289498E-7 : f32
    %65 = vector.broadcast %cst_28 : f32 to vector<8x256xf32>
    %66 = arith.addf %64, %65 : vector<8x256xf32>
    %67 = arith.mulf %66, %19 : vector<8x256xf32>
    %cst_29 = arith.constant 3.67520397E-6 : f32
    %68 = vector.broadcast %cst_29 : f32 to vector<8x256xf32>
    %69 = arith.addf %67, %68 : vector<8x256xf32>
    %70 = arith.mulf %69, %19 : vector<8x256xf32>
    %cst_30 = arith.constant 3.01160053E-5 : f32
    %71 = vector.broadcast %cst_30 : f32 to vector<8x256xf32>
    %72 = arith.addf %70, %71 : vector<8x256xf32>
    %73 = arith.mulf %72, %19 : vector<8x256xf32>
    %cst_31 = arith.constant 1.57926625E-4 : f32
    %74 = vector.broadcast %cst_31 : f32 to vector<8x256xf32>
    %75 = arith.addf %73, %74 : vector<8x256xf32>
    %76 = arith.mulf %75, %19 : vector<8x256xf32>
    %cst_32 = arith.constant 5.17554698E-4 : f32
    %77 = vector.broadcast %cst_32 : f32 to vector<8x256xf32>
    %78 = arith.addf %76, %77 : vector<8x256xf32>
    %79 = arith.mulf %78, %19 : vector<8x256xf32>
    %cst_33 = arith.constant 9.69131477E-4 : f32
    %80 = vector.broadcast %cst_33 : f32 to vector<8x256xf32>
    %81 = arith.addf %79, %80 : vector<8x256xf32>
    %82 = arith.mulf %81, %19 : vector<8x256xf32>
    %cst_34 = arith.constant 7.938740e-04 : f32
    %83 = vector.broadcast %cst_34 : f32 to vector<8x256xf32>
    %84 = arith.addf %82, %83 : vector<8x256xf32>
    %cst_35 = arith.constant 7.000000e+00 : f32
    %85 = vector.broadcast %cst_35 : f32 to vector<8x256xf32>
    %86 = arith.addf %19, %85 : vector<8x256xf32>
    %87 = arith.mulf %19, %86 : vector<8x256xf32>
    %cst_36 = arith.constant 2.32830644E-10 : f32
    %88 = vector.broadcast %cst_36 : f32 to vector<8x256xf32>
    %89 = arith.mulf %87, %88 : vector<8x256xf32>
    %cst_37 = arith.constant 6.000000e+00 : f32
    %90 = vector.broadcast %cst_37 : f32 to vector<8x256xf32>
    %91 = arith.addf %87, %90 : vector<8x256xf32>
    %92 = arith.mulf %89, %91 : vector<8x256xf32>
    %cst_38 = arith.constant 1.000000e+01 : f32
    %93 = vector.broadcast %cst_38 : f32 to vector<8x256xf32>
    %94 = arith.addf %87, %93 : vector<8x256xf32>
    %cst_39 = arith.constant 1.200000e+01 : f32
    %95 = vector.broadcast %cst_39 : f32 to vector<8x256xf32>
    %96 = arith.addf %87, %95 : vector<8x256xf32>
    %97 = arith.mulf %94, %96 : vector<8x256xf32>
    %98 = arith.mulf %92, %97 : vector<8x256xf32>
    %cst_40 = arith.constant 2.32830644E-10 : f32
    %99 = vector.broadcast %cst_40 : f32 to vector<8x256xf32>
    %100 = arith.mulf %99, %20 : vector<8x256xf32>
    %cst_41 = arith.constant 1.22139072E-8 : f32
    %101 = vector.broadcast %cst_41 : f32 to vector<8x256xf32>
    %102 = arith.addf %100, %101 : vector<8x256xf32>
    %103 = arith.mulf %102, %20 : vector<8x256xf32>
    %cst_42 = arith.constant 2.80289498E-7 : f32
    %104 = vector.broadcast %cst_42 : f32 to vector<8x256xf32>
    %105 = arith.addf %103, %104 : vector<8x256xf32>
    %106 = arith.mulf %105, %20 : vector<8x256xf32>
    %cst_43 = arith.constant 3.67520397E-6 : f32
    %107 = vector.broadcast %cst_43 : f32 to vector<8x256xf32>
    %108 = arith.addf %106, %107 : vector<8x256xf32>
    %109 = arith.mulf %108, %20 : vector<8x256xf32>
    %cst_44 = arith.constant 3.01160053E-5 : f32
    %110 = vector.broadcast %cst_44 : f32 to vector<8x256xf32>
    %111 = arith.addf %109, %110 : vector<8x256xf32>
    %112 = arith.mulf %111, %20 : vector<8x256xf32>
    %cst_45 = arith.constant 1.57926625E-4 : f32
    %113 = vector.broadcast %cst_45 : f32 to vector<8x256xf32>
    %114 = arith.addf %112, %113 : vector<8x256xf32>
    %115 = arith.mulf %114, %20 : vector<8x256xf32>
    %cst_46 = arith.constant 5.17554698E-4 : f32
    %116 = vector.broadcast %cst_46 : f32 to vector<8x256xf32>
    %117 = arith.addf %115, %116 : vector<8x256xf32>
    %118 = arith.mulf %117, %20 : vector<8x256xf32>
    %cst_47 = arith.constant 9.69131477E-4 : f32
    %119 = vector.broadcast %cst_47 : f32 to vector<8x256xf32>
    %120 = arith.addf %118, %119 : vector<8x256xf32>
    %121 = arith.mulf %120, %20 : vector<8x256xf32>
    %cst_48 = arith.constant 7.938740e-04 : f32
    %122 = vector.broadcast %cst_48 : f32 to vector<8x256xf32>
    %123 = arith.addf %121, %122 : vector<8x256xf32>
    %cst_49 = arith.constant 7.000000e+00 : f32
    %124 = vector.broadcast %cst_49 : f32 to vector<8x256xf32>
    %125 = arith.addf %20, %124 : vector<8x256xf32>
    %126 = arith.mulf %20, %125 : vector<8x256xf32>
    %cst_50 = arith.constant 2.32830644E-10 : f32
    %127 = vector.broadcast %cst_50 : f32 to vector<8x256xf32>
    %128 = arith.mulf %126, %127 : vector<8x256xf32>
    %cst_51 = arith.constant 6.000000e+00 : f32
    %129 = vector.broadcast %cst_51 : f32 to vector<8x256xf32>
    %130 = arith.addf %126, %129 : vector<8x256xf32>
    %131 = arith.mulf %128, %130 : vector<8x256xf32>
    %cst_52 = arith.constant 1.000000e+01 : f32
    %132 = vector.broadcast %cst_52 : f32 to vector<8x256xf32>
    %133 = arith.addf %126, %132 : vector<8x256xf32>
    %cst_53 = arith.constant 1.200000e+01 : f32
    %134 = vector.broadcast %cst_53 : f32 to vector<8x256xf32>
    %135 = arith.addf %126, %134 : vector<8x256xf32>
    %136 = arith.mulf %133, %135 : vector<8x256xf32>
    %137 = arith.mulf %131, %136 : vector<8x256xf32>
    %138 = arith.divf %45, %59 : vector<8x256xf32>
    %139 = arith.divf %84, %123 : vector<8x256xf32>
    %140 = arith.mulf %138, %139 : vector<8x256xf32>
    %141 = arith.divf %137, %98 : vector<8x256xf32>
    %142 = arith.mulf %140, %141 : vector<8x256xf32>
    %cst_54 = arith.constant 6.500000e+00 : f32
    %143 = vector.broadcast %cst_54 : f32 to vector<8x256xf32>
    %144 = arith.addf %11, %143 : vector<8x256xf32>
    %cst_55 = arith.constant 7.500000e+00 : f32
    %145 = vector.broadcast %cst_55 : f32 to vector<8x256xf32>
    %146 = arith.addf %3, %145 : vector<8x256xf32>
    %cst_56 = arith.constant 6.500000e+00 : f32
    %147 = vector.broadcast %cst_56 : f32 to vector<8x256xf32>
    %148 = arith.addf %20, %147 : vector<8x256xf32>
    %cst_57 = arith.constant 5.000000e-01 : f32
    %149 = vector.broadcast %cst_57 : f32 to vector<8x256xf32>
    %150 = arith.subf %11, %149 : vector<8x256xf32>
    %151 = math.log %144 : vector<8x256xf32>
    %152 = arith.mulf %150, %151 : vector<8x256xf32>
    %cst_58 = arith.constant -6.58106136 : f32
    %153 = vector.broadcast %cst_58 : f32 to vector<8x256xf32>
    %154 = arith.addf %153, %152 : vector<8x256xf32>
    %cst_59 = arith.constant 5.000000e-01 : f32
    %155 = vector.broadcast %cst_59 : f32 to vector<8x256xf32>
    %156 = arith.addf %3, %155 : vector<8x256xf32>
    %157 = arith.divf %146, %148 : vector<8x256xf32>
    %158 = math.log %157 : vector<8x256xf32>
    %159 = arith.mulf %156, %158 : vector<8x256xf32>
    %160 = arith.addf %154, %159 : vector<8x256xf32>
    %cst_60 = arith.constant 1.000000e+00 : f32
    %161 = vector.broadcast %cst_60 : f32 to vector<8x256xf32>
    %162 = arith.subf %11, %161 : vector<8x256xf32>
    %163 = math.log %148 : vector<8x256xf32>
    %164 = arith.mulf %162, %163 : vector<8x256xf32>
    %165 = arith.subf %160, %164 : vector<8x256xf32>
    %166 = math.log %142 : vector<8x256xf32>
    %167 = arith.addf %165, %166 : vector<8x256xf32>
    %168 = arith.subf %17, %12 : vector<8x256xf32>
    %169 = arith.mulf %8, %168 : vector<8x256xf32>
    %170 = arith.addf %167, %169 : vector<8x256xf32>
    %171 = arith.subf %17, %15 : vector<8x256xf32>
    %172 = arith.mulf %3, %171 : vector<8x256xf32>
    %173 = arith.addf %170, %172 : vector<8x256xf32>
    %cst_61 = arith.constant 0.000000e+00 : f32
    %174 = vector.broadcast %cst_61 : f32 to vector<8x256xf32>
    %175 = arith.subf %174, %169 : vector<8x256xf32>
    %176 = math.exp %175 : vector<8x256xf32>
    %cst_62 = arith.constant 9.99999993E-9 : f32
    %177 = vector.broadcast %cst_62 : f32 to vector<8x256xf32>
    %178 = arith.cmpf ole, %3, %177 : vector<8x256xf32>
    %cst_63 = arith.constant 1.000000e+00 : f32
    %179 = vector.broadcast %cst_63 : f32 to vector<8x256xf32>
    %180 = arith.subf %179, %9 : vector<8x256xf32>
    %181 = arith.mulf %180, %176 : vector<8x256xf32>
    %182 = arith.addf %9, %181 : vector<8x256xf32>
    %cst_64 = arith.constant 1.000000e-10 : f32
    %183 = vector.broadcast %cst_64 : f32 to vector<8x256xf32>
    %184 = arith.addf %182, %183 : vector<8x256xf32>
    %cst_65 = arith.constant 1.000000e+00 : f32
    %185 = vector.broadcast %cst_65 : f32 to vector<8x256xf32>
    %186 = arith.subf %185, %9 : vector<8x256xf32>
    %cst_66 = arith.constant 1.000000e-10 : f32
    %187 = vector.broadcast %cst_66 : f32 to vector<8x256xf32>
    %188 = arith.addf %186, %187 : vector<8x256xf32>
    %189 = arith.select %178, %184, %188 : vector<8x256xi1>, vector<8x256xf32>
    %cst_67 = arith.constant 0.000000e+00 : f32
    %190 = vector.broadcast %cst_67 : f32 to vector<8x256xf32>
    %191 = arith.select %178, %190, %173 : vector<8x256xi1>, vector<8x256xf32>
    %192 = math.log %189 : vector<8x256xf32>
    %193 = arith.subf %191, %192 : vector<8x256xf32>
    %c0_68 = arith.constant 0 : index
    %c0_69 = arith.constant 0 : index
    %194 = vector.load %arg8[%c0_68, %c0_69] : memref<8x128xf32, #tpu.memory_space<vmem>>, vector<8x128xf32>
    %195 = vector.extract_strided_slice %193 {offsets = [0, 0], sizes = [8, 128], strides = [1, 1]} : vector<8x256xf32> to vector<8x128xf32>
    %196 = vector.extract_strided_slice %193 {offsets = [0, 128], sizes = [8, 128], strides = [1, 1]} : vector<8x256xf32> to vector<8x128xf32>
    %197 = arith.addf %195, %196 : vector<8x128xf32>
    %198 = arith.addf %194, %197 : vector<8x128xf32>
    %c0_70 = arith.constant 0 : index
    %c0_71 = arith.constant 0 : index
    %199 = vector.load %arg8[%c0_70, %c0_71] : memref<8x128xf32, #tpu.memory_space<vmem>>, vector<8x128xf32>
    tpu.vector_store %arg8[%c0_70, %c0_71], %198 {strides = array<i32>} : memref<8x128xf32, #tpu.memory_space<vmem>>, vector<8x128xf32>,
    %c0_i32_72 = arith.constant 0 : i32
    %200 = arith.cmpi eq, %arg1, %c0_i32_72 : i32
    %201 = arith.extui %200 : i1 to i32
    %c0_i32_73 = arith.constant 0 : i32
    %202 = arith.cmpi ne, %201, %c0_i32_73 : i32
    scf.if %202 {
      %c0_74 = arith.constant 0 : index
      %c0_75 = arith.constant 0 : index
      %203 = vector.load %arg8[%c0_74, %c0_75] : memref<8x128xf32, #tpu.memory_space<vmem>>, vector<8x128xf32>
      %c0_76 = arith.constant 0 : index
      %c0_77 = arith.constant 0 : index
      %204 = vector.load %arg7[%c0_76, %c0_77] : memref<8x128xf32, #tpu.memory_space<vmem>>, vector<8x128xf32>
      tpu.vector_store %arg7[%c0_76, %c0_77], %203 {strides = array<i32>} : memref<8x128xf32, #tpu.memory_space<vmem>>, vector<8x128xf32>,
    } else {
    }
    return
  }
  func.func @transform_0(%arg0: i32, %arg1: i32) -> (i32, i32) {
    %c0_i32 = arith.constant 0 : i32
    %c0_i32_0 = arith.constant 0 : i32
    return %arg0, %c0_i32 : i32, i32
  }
  func.func @transform_1(%arg0: i32, %arg1: i32) -> (i32, i32) {
    %c0_i32 = arith.constant 0 : i32
    return %arg0, %arg1 : i32, i32
  }
  func.func @transform_2(%arg0: i32, %arg1: i32) -> (i32, i32) {
    %c0_i32 = arith.constant 0 : i32
    return %arg0, %arg1 : i32, i32
  }
  func.func @transform_3(%arg0: i32, %arg1: i32) -> (i32, i32) {
    %c0_i32 = arith.constant 0 : i32
    return %arg0, %arg1 : i32, i32
  }
  func.func @transform_4(%arg0: i32, %arg1: i32) -> (i32, i32) {
    %c0_i32 = arith.constant 0 : i32
    return %arg0, %arg1 : i32, i32
  }
  func.func @transform_5(%arg0: i32, %arg1: i32) -> (i32, i32) {
    %c0_i32 = arith.constant 0 : i32
    %c0_i32_0 = arith.constant 0 : i32
    return %arg0, %c0_i32 : i32, i32
  }
}

</mosaic_0001>

<llo_original>
// kernel: tpu_custom_call.1
$region0: #{tpu_custom_call.1}
  #allocation0 [shape = 'u32[]', space=smem, size = 0x4, offset = 0x4, fixed_abs, tag = 'smem constant byte address 0x4 - core index']
  #allocation1 [shape = 'u32[144,128]{1,0:T(1,128)}', space=vmem, size = 0x12000, scoped, tag = 'internal scratch']
  #allocation2 [shape = 'f32[8,128]{1,0:T(8,128)}', space=vmem, size = 0x1000, scoped, tag = 'scratch operand']
  %s0 = inlined_call_operand.vmem [shape: f32[8,1], index: 0, kind: input, shape index: {}]
  %s1 = inlined_call_operand.hbm [shape: f32[8,256], index: 1, kind: input, shape index: {}]
  %s2 = inlined_call_operand.vmem [shape: f32[8,256], index: 2, kind: input, shape index: {}]
  %s3 = inlined_call_operand.hbm [shape: f32[8,256], index: 3, kind: input, shape index: {}]
  %s4 = inlined_call_operand.hbm [shape: f32[8,256], index: 4, kind: input, shape index: {}]
  %s5 = inlined_call_operand.hbm [shape: f32[8,128], index: 5, kind: output, shape index: {}]
  %s6 = sld [smem:[#allocation0]]
  $region50: #{tpu_custom_call.1} parent=0
    _
  %s8 = ssub.s32 1, %s6
  %s9 = scalar_select 0, %s8, %s6
  $region1: #{tpu_custom_call.1} parent=0
    #allocation3 [shape = 'u8[8192]{0}', space=vmem, size = 0x2000, scoped, tag = 'input window, operand 1, single buffered']
    #allocation4 [shape = 's32[1]{0}', space=sflag, size = 0x4, scoped, tag = 'scoped memory for tpu_custom_call.1']
    #allocation5 [shape = 's32[1]{0}', space=sflag, size = 0x4, scoped, tag = 'scoped memory for tpu_custom_call.1']
    #allocation6 [shape = 'u8[8192]{0}', space=vmem, size = 0x2000, scoped, tag = 'input window, operand 3, single buffered']
    #allocation7 [shape = 's32[1]{0}', space=sflag, size = 0x4, scoped, tag = 'scoped memory for tpu_custom_call.1']
    #allocation8 [shape = 'u8[8192]{0}', space=vmem, size = 0x2000, scoped, tag = 'input window, operand 4, single buffered']
    #allocation9 [shape = 'u8[4096]{0}', space=vmem, size = 0x1000, scoped, tag = 'output window, operand 0, single buffered']
    %10 = vsyncpa [#allocation4], 0
    %11 = vsyncpa [#allocation7], 0
    %12 = vsyncpa [#allocation5], 0
    // Predicated region
    $region2: #{tpu_custom_call.1} parent=1 // pred_check
      _
    $region3: #{tpu_custom_call.1} parent=1 // pred_check_branch
      %14 = sbr.rel (0) target = $region5
    $region4: #{tpu_custom_call.1} parent=1 // pred_region
      _
    $region5: #{tpu_custom_call.1} parent=1 // pred_fallthru
      _
    // Predicated region
    $region6: #{tpu_custom_call.1} parent=1 // pred_check
      _
    $region7: #{tpu_custom_call.1} parent=1 // pred_check_branch
      %16 = sbr.rel (0) target = $region9
    $region8: #{tpu_custom_call.1} parent=1 // pred_region
      %s18 = ssub.s32 256, 256
      %19 = vsyncadd [#allocation4], %s18
      %s21 = sshll.u32 [#allocation3], 4
      %s22 = int_to_ptr.vmem [resolvable:$true] %s21
      %24 = dma.hbm_to_vmem [thread:$0]  %s1, 256, %s22, [#allocation4]
    $region9: #{tpu_custom_call.1} parent=1 // pred_fallthru
      _
    // Predicated region
    $region10: #{tpu_custom_call.1} parent=1 // pred_check
      _
    $region11: #{tpu_custom_call.1} parent=1 // pred_check_branch
      %26 = sbr.rel (0) target = $region13
    $region12: #{tpu_custom_call.1} parent=1 // pred_region
      _
    $region13: #{tpu_custom_call.1} parent=1 // pred_fallthru
      _
    // Predicated region
    $region14: #{tpu_custom_call.1} parent=1 // pred_check
      _
    $region15: #{tpu_custom_call.1} parent=1 // pred_check_branch
      %28 = sbr.rel (0) target = $region17
    $region16: #{tpu_custom_call.1} parent=1 // pred_region
      %s30 = ssub.s32 256, 256
      %31 = vsyncadd [#allocation7], %s30
      %s33 = sshll.u32 [#allocation6], 4
      %s34 = int_to_ptr.vmem [resolvable:$true] %s33
      %36 = dma.hbm_to_vmem [thread:$0]  %s3, 256, %s34, [#allocation7]
    $region17: #{tpu_custom_call.1} parent=1 // pred_fallthru
      _
    // Predicated region
    $region18: #{tpu_custom_call.1} parent=1 // pred_check
      _
    $region19: #{tpu_custom_call.1} parent=1 // pred_check_branch
      %38 = sbr.rel (0) target = $region21
    $region20: #{tpu_custom_call.1} parent=1 // pred_region
      %s40 = ssub.s32 256, 256
      %41 = vsyncadd [#allocation7], %s40
      %s43 = sshll.u32 [#allocation8], 4
      %s44 = int_to_ptr.vmem [resolvable:$true] %s43
      %46 = dma.hbm_to_vmem [thread:$0]  %s4, 256, %s44, [#allocation7]
    $region21: #{tpu_custom_call.1} parent=1 // pred_fallthru
      _
    // Predicated region
    $region22: #{tpu_custom_call.1} parent=1 // pred_check
      _
    $region23: #{tpu_custom_call.1} parent=1 // pred_check_branch
      %48 = sbr.rel (0) target = $region25
    $region24: #{tpu_custom_call.1} parent=1 // pred_region
      %49 = dma.done [#allocation4], 256
    $region25: #{tpu_custom_call.1} parent=1 // pred_fallthru
      _
    // Predicated region
    $region26: #{tpu_custom_call.1} parent=1 // pred_check
      _
    $region27: #{tpu_custom_call.1} parent=1 // pred_check_branch
      %51 = sbr.rel (0) target = $region29
    $region28: #{tpu_custom_call.1} parent=1 // pred_region
      %52 = dma.done [#allocation7], 256
    $region29: #{tpu_custom_call.1} parent=1 // pred_fallthru
      _
    // Predicated region
    $region30: #{tpu_custom_call.1} parent=1 // pred_check
      _
    $region31: #{tpu_custom_call.1} parent=1 // pred_check_branch
      %54 = sbr.rel (0) target = $region33
    $region32: #{tpu_custom_call.1} parent=1 // pred_region
      %55 = dma.done [#allocation7], 256
    $region33: #{tpu_custom_call.1} parent=1 // pred_fallthru
      _
    %p56 = scmp.eq.s32.totalorder 0, 0
    // Predicated region
    $region34: #{tpu_custom_call.1} parent=1 // pred_check
      %p57 = pneg %p56
    $region35: #{tpu_custom_call.1} parent=1 // pred_check_branch
      %59 = sbr.rel (%p57) target = $region37
    $region36: #{tpu_custom_call.1} parent=1 // pred_region
      %60 = vst [vmem:[#allocation2] sm:$0xff] 0.0
    $region37: #{tpu_custom_call.1} parent=1 // pred_fallthru
      _
    %v61 = vld [vmem:[#allocation3] sm:$0xff]
    %v62 = vld [vmem:[#allocation3 + $0x8] sm:$0xff]
    %v63 = vld [vmem:[%s2] sm:$0xff]
    %v64 = vld [vmem:[%s2 + $0x8] sm:$0xff]
    %v65 = vld [vmem:[%s0] sm:$0xff]
    %67 = vset.pattern.permute.xlu0 0
    %68 = vperm.xlu0 %67, %v65
    %v69 = vpop.permute.xlu0 %68
    %v71 = vmul.f32 %v63, %v69
    %v72 = vmul.f32 %v64, %v69
    %v73 = vld [vmem:[#allocation6] sm:$0xff]
    %v74 = vld [vmem:[#allocation6 + $0x8] sm:$0xff]
    %v75 = vld [vmem:[#allocation8] sm:$0xff]
    %v76 = vld [vmem:[#allocation8 + $0x8] sm:$0xff]
    %v77 = vadd.f32 %v73, 1e-10
    %v78 = vadd.f32 %v74, 1e-10
    %v79 = vlog2.pop %v77
    %v80 = vmul.f32 %v79, 0.6931472
    %v81 = vlog2.pop %v78
    %v82 = vmul.f32 %v81, 0.6931472
    %v83 = vadd.f32 %v71, 1e-10
    %v84 = vadd.f32 %v72, 1e-10
    %v85 = vlog2.pop %v83
    %v86 = vmul.f32 %v85, 0.6931472
    %v87 = vlog2.pop %v84
    %v88 = vmul.f32 %v87, 0.6931472
    %v89 = vadd.f32 %v77, %v71
    %v90 = vadd.f32 %v78, %v72
    %v91 = vlog2.pop %v89
    %v92 = vmul.f32 %v91, 0.6931472
    %v93 = vlog2.pop %v90
    %v94 = vmul.f32 %v93, 0.6931472
    %v95 = vadd.f32 %v61, 1.0
    %v96 = vadd.f32 %v62, 1.0
    %v97 = vadd.f32 %v61, %v77
    %v98 = vadd.f32 %v62, %v78
    %v99 = vmul.f32 %v77, 2.3283064e-10
    %v100 = vmul.f32 %v78, 2.3283064e-10
    %v101 = vadd.f32 %v99, 1.2213907e-08
    %v102 = vadd.f32 %v100, 1.2213907e-08
    %v103 = vmul.f32 %v101, %v77
    %v104 = vmul.f32 %v102, %v78
    %v105 = vadd.f32 %v103, 2.802895e-07
    %v106 = vadd.f32 %v104, 2.802895e-07
    %v107 = vmul.f32 %v105, %v77
    %v108 = vmul.f32 %v106, %v78
    %v109 = vadd.f32 %v107, 3.675204e-06
    %v110 = vadd.f32 %v108, 3.675204e-06
    %v111 = vmul.f32 %v109, %v77
    %v112 = vmul.f32 %v110, %v78
    %v113 = vadd.f32 %v111, 3.0116005e-05
    %v114 = vadd.f32 %v112, 3.0116005e-05
    %v115 = vmul.f32 %v113, %v77
    %v116 = vmul.f32 %v114, %v78
    %v117 = vadd.f32 %v115, 0.00015792662
    %v118 = vadd.f32 %v116, 0.00015792662
    %v119 = vmul.f32 %v117, %v77
    %v120 = vmul.f32 %v118, %v78
    %v121 = vadd.f32 %v119, 0.0005175547
    %v122 = vadd.f32 %v120, 0.0005175547
    %v123 = vmul.f32 %v121, %v77
    %v124 = vmul.f32 %v122, %v78
    %v125 = vadd.f32 %v123, 0.0009691315
    %v126 = vadd.f32 %v124, 0.0009691315
    %v127 = vmul.f32 %v125, %v77
    %v128 = vmul.f32 %v126, %v78
    %v129 = vadd.f32 %v127, 0.000793874
    %v130 = vadd.f32 %v128, 0.000793874
    %v131 = vadd.f32 %v77, 7.0
    %v132 = vadd.f32 %v78, 7.0
    %v133 = vmul.f32 %v77, %v131
    %v134 = vmul.f32 %v78, %v132
    %v135 = vmul.f32 %v133, 2.3283064e-10
    %v136 = vmul.f32 %v134, 2.3283064e-10
    %v137 = vadd.f32 %v133, 6.0
    %v138 = vadd.f32 %v134, 6.0
    %v139 = vmul.f32 %v135, %v137
    %v140 = vmul.f32 %v136, %v138
    %v141 = vadd.f32 %v133, 10.0
    %v142 = vadd.f32 %v134, 10.0
    %v143 = vadd.f32 %v133, 12.0
    %v144 = vadd.f32 %v134, 12.0
    %v145 = vmul.f32 %v141, %v143
    %v146 = vmul.f32 %v142, %v144
    %v147 = vmul.f32 %v139, %v145
    %v148 = vmul.f32 %v140, %v146
    %v149 = vmul.f32 %v95, 2.3283064e-10
    %v150 = vmul.f32 %v96, 2.3283064e-10
    %v151 = vadd.f32 %v149, 1.2213907e-08
    %v152 = vadd.f32 %v150, 1.2213907e-08
    %v153 = vmul.f32 %v151, %v95
    %v154 = vmul.f32 %v152, %v96
    %v155 = vadd.f32 %v153, 2.802895e-07
    %v156 = vadd.f32 %v154, 2.802895e-07
    %v157 = vmul.f32 %v155, %v95
    %v158 = vmul.f32 %v156, %v96
    %v159 = vadd.f32 %v157, 3.675204e-06
    %v160 = vadd.f32 %v158, 3.675204e-06
    %v161 = vmul.f32 %v159, %v95
    %v162 = vmul.f32 %v160, %v96
    %v163 = vadd.f32 %v161, 3.0116005e-05
    %v164 = vadd.f32 %v162, 3.0116005e-05
    %v165 = vmul.f32 %v163, %v95
    %v166 = vmul.f32 %v164, %v96
    %v167 = vadd.f32 %v165, 0.00015792662
    %v168 = vadd.f32 %v166, 0.00015792662
    %v169 = vmul.f32 %v167, %v95
    %v170 = vmul.f32 %v168, %v96
    %v171 = vadd.f32 %v169, 0.0005175547
    %v172 = vadd.f32 %v170, 0.0005175547
    %v173 = vmul.f32 %v171, %v95
    %v174 = vmul.f32 %v172, %v96
    %v175 = vadd.f32 %v173, 0.0009691315
    %v176 = vadd.f32 %v174, 0.0009691315
    %v177 = vmul.f32 %v175, %v95
    %v178 = vmul.f32 %v176, %v96
    %v179 = vadd.f32 %v177, 0.000793874
    %v180 = vadd.f32 %v178, 0.000793874
    %v181 = vadd.f32 %v95, 7.0
    %v182 = vadd.f32 %v96, 7.0
    %v183 = vmul.f32 %v95, %v181
    %v184 = vmul.f32 %v96, %v182
    %v185 = vmul.f32 %v183, 2.3283064e-10
    %v186 = vmul.f32 %v184, 2.3283064e-10
    %v187 = vadd.f32 %v183, 6.0
    %v188 = vadd.f32 %v184, 6.0
    %v189 = vmul.f32 %v185, %v187
    %v190 = vmul.f32 %v186, %v188
    %v191 = vadd.f32 %v183, 10.0
    %v192 = vadd.f32 %v184, 10.0
    %v193 = vadd.f32 %v183, 12.0
    %v194 = vadd.f32 %v184, 12.0
    %v195 = vmul.f32 %v191, %v193
    %v196 = vmul.f32 %v192, %v194
    %v197 = vmul.f32 %v189, %v195
    %v198 = vmul.f32 %v190, %v196
    %v199 = vmul.f32 %v97, 2.3283064e-10
    %v200 = vmul.f32 %v98, 2.3283064e-10
    %v201 = vadd.f32 %v199, 1.2213907e-08
    %v202 = vadd.f32 %v200, 1.2213907e-08
    %v203 = vmul.f32 %v201, %v97
    %v204 = vmul.f32 %v202, %v98
    %v205 = vadd.f32 %v203, 2.802895e-07
    %v206 = vadd.f32 %v204, 2.802895e-07
    %v207 = vmul.f32 %v205, %v97
    %v208 = vmul.f32 %v206, %v98
    %v209 = vadd.f32 %v207, 3.675204e-06
    %v210 = vadd.f32 %v208, 3.675204e-06
    %v211 = vmul.f32 %v209, %v97
    %v212 = vmul.f32 %v210, %v98
    %v213 = vadd.f32 %v211, 3.0116005e-05
    %v214 = vadd.f32 %v212, 3.0116005e-05
    %v215 = vmul.f32 %v213, %v97
    %v216 = vmul.f32 %v214, %v98
    %v217 = vadd.f32 %v215, 0.00015792662
    %v218 = vadd.f32 %v216, 0.00015792662
    %v219 = vmul.f32 %v217, %v97
    %v220 = vmul.f32 %v218, %v98
    %v221 = vadd.f32 %v219, 0.0005175547
    %v222 = vadd.f32 %v220, 0.0005175547
    %v223 = vmul.f32 %v221, %v97
    %v224 = vmul.f32 %v222, %v98
    %v225 = vadd.f32 %v223, 0.0009691315
    %v226 = vadd.f32 %v224, 0.0009691315
    %v227 = vmul.f32 %v225, %v97
    %v228 = vmul.f32 %v226, %v98
    %v229 = vadd.f32 %v227, 0.000793874
    %v230 = vadd.f32 %v228, 0.000793874
    %v231 = vadd.f32 %v97, 7.0
    %v232 = vadd.f32 %v98, 7.0
    %v233 = vmul.f32 %v97, %v231
    %v234 = vmul.f32 %v98, %v232
    %v235 = vmul.f32 %v233, 2.3283064e-10
    %v236 = vmul.f32 %v234, 2.3283064e-10
    %v237 = vadd.f32 %v233, 6.0
    %v238 = vadd.f32 %v234, 6.0
    %v239 = vmul.f32 %v235, %v237
    %v240 = vmul.f32 %v236, %v238
    %v241 = vadd.f32 %v233, 10.0
    %v242 = vadd.f32 %v234, 10.0
    %v243 = vadd.f32 %v233, 12.0
    %v244 = vadd.f32 %v234, 12.0
    %v245 = vmul.f32 %v241, %v243
    %v246 = vmul.f32 %v242, %v244
    %v247 = vmul.f32 %v239, %v245
    %v248 = vmul.f32 %v240, %v246
    %v249 = vrcp.pop %v147
    %v250 = vmul.f32 %v129, %v249
    %v251 = vrcp.pop %v148
    %v252 = vmul.f32 %v130, %v251
    %v253 = vrcp.pop %v229
    %v254 = vmul.f32 %v179, %v253
    %v255 = vrcp.pop %v230
    %v256 = vmul.f32 %v180, %v255
    %v257 = vmul.f32 %v250, %v254
    %v258 = vmul.f32 %v252, %v256
    %v259 = vrcp.pop %v197
    %v260 = vmul.f32 %v247, %v259
    %v261 = vrcp.pop %v198
    %v262 = vmul.f32 %v248, %v261
    %v263 = vmul.f32 %v257, %v260
    %v264 = vmul.f32 %v258, %v262
    %v265 = vadd.f32 %v77, 6.5
    %v266 = vadd.f32 %v78, 6.5
    %v267 = vadd.f32 %v61, 7.5
    %v268 = vadd.f32 %v62, 7.5
    %v269 = vadd.f32 %v97, 6.5
    %v270 = vadd.f32 %v98, 6.5
    %v271 = vsub.f32 %v77, 0.5
    %v272 = vsub.f32 %v78, 0.5
    %v273 = vlog2.pop %v265
    %v274 = vmul.f32 %v273, 0.6931472
    %v275 = vlog2.pop %v266
    %v276 = vmul.f32 %v275, 0.6931472
    %v277 = vmul.f32 %v271, %v274
    %v278 = vmul.f32 %v272, %v276
    %v279 = vadd.f32 %v277, -6.5810614
    %v280 = vadd.f32 %v278, -6.5810614
    %v281 = vadd.f32 %v61, 0.5
    %v282 = vadd.f32 %v62, 0.5
    %v283 = vrcp.pop %v269
    %v284 = vmul.f32 %v267, %v283
    %v285 = vrcp.pop %v270
    %v286 = vmul.f32 %v268, %v285
    %v287 = vlog2.pop %v284
    %v288 = vmul.f32 %v287, 0.6931472
    %v289 = vlog2.pop %v286
    %v290 = vmul.f32 %v289, 0.6931472
    %v291 = vmul.f32 %v281, %v288
    %v292 = vmul.f32 %v282, %v290
    %v293 = vadd.f32 %v279, %v291
    %v294 = vadd.f32 %v280, %v292
    %v295 = vsub.f32 %v77, 1.0
    %v296 = vsub.f32 %v78, 1.0
    %v297 = vlog2.pop %v269
    %v298 = vmul.f32 %v297, 0.6931472
    %v299 = vlog2.pop %v270
    %v300 = vmul.f32 %v299, 0.6931472
    %v301 = vmul.f32 %v295, %v298
    %v302 = vmul.f32 %v296, %v300
    %v303 = vsub.f32 %v293, %v301
    %v304 = vsub.f32 %v294, %v302
    %v305 = vlog2.pop %v263
    %v306 = vmul.f32 %v305, 0.6931472
    %v307 = vlog2.pop %v264
    %v308 = vmul.f32 %v307, 0.6931472
    %v309 = vadd.f32 %v303, %v306
    %v310 = vadd.f32 %v304, %v308
    %v311 = vsub.f32 %v92, %v80
    %v312 = vsub.f32 %v94, %v82
    %v313 = vmul.f32 %v73, %v311
    %v314 = vmul.f32 %v74, %v312
    %v315 = vadd.f32 %v309, %v313
    %v316 = vadd.f32 %v310, %v314
    %v317 = vsub.f32 %v92, %v86
    %v318 = vsub.f32 %v94, %v88
    %v319 = vmul.f32 %v61, %v317
    %v320 = vmul.f32 %v62, %v318
    %v321 = vadd.f32 %v315, %v319
    %v322 = vadd.f32 %v316, %v320
    %v323 = vsub.f32 0.0, %v313
    %v324 = vsub.f32 0.0, %v314
    %v325 = vmul.f32 %v323, 1.442695
    %v326 = vpow.pop %v325
    %v327 = vmul.f32 %v324, 1.442695
    %v328 = vpow.pop %v327
    %vm329 = vcmp.le.f32.partialorder %v61, 1e-08
    %vm330 = vcmp.le.f32.partialorder %v62, 1e-08
    %v331 = vsub.f32 1.0, %v75
    %v332 = vsub.f32 1.0, %v76
    %v333 = vmul.f32 %v331, %v326
    %v334 = vmul.f32 %v332, %v328
    %v335 = vadd.f32 %v75, %v333
    %v336 = vadd.f32 %v76, %v334
    %v337 = vadd.f32 %v335, 1e-10
    %v338 = vadd.f32 %v336, 1e-10
    %v339 = vadd.f32 %v331, 1e-10
    %v340 = vadd.f32 %v332, 1e-10
    %v341 = vsel %vm329, %v337, %v339
    %v342 = vsel %vm330, %v338, %v340
    %v343 = vsel %vm329, 0.0, %v321
    %v344 = vsel %vm330, 0.0, %v322
    %v345 = vlog2.pop %v341
    %v346 = vmul.f32 %v345, 0.6931472
    %v347 = vlog2.pop %v342
    %v348 = vmul.f32 %v347, 0.6931472
    %v349 = vsub.f32 %v343, %v346
    %v350 = vsub.f32 %v344, %v348
    %v351 = vld [vmem:[#allocation2] sm:$0xff]
    %v352 = vadd.f32 %v349, %v350
    %v353 = vadd.f32 %v351, %v352
    %354 = vst [vmem:[#allocation2] sm:$0xff] %v353
    // Predicated region
    $region38: #{tpu_custom_call.1} parent=1 // pred_check
      %p355 = pneg %p56
    $region39: #{tpu_custom_call.1} parent=1 // pred_check_branch
      %357 = sbr.rel (%p355) target = $region41
    $region40: #{tpu_custom_call.1} parent=1 // pred_region
      %v358 = vld [vmem:[#allocation2] sm:$0xff]
      %359 = vst [vmem:[#allocation9] sm:$0xff] %v358
    $region41: #{tpu_custom_call.1} parent=1 // pred_fallthru
      _
    // Predicated region
    $region42: #{tpu_custom_call.1} parent=1 // pred_check
      _
    $region43: #{tpu_custom_call.1} parent=1 // pred_check_branch
      %361 = sbr.rel (0) target = $region45
    $region44: #{tpu_custom_call.1} parent=1 // pred_region
      %s363 = ssub.s32 128, 128
      %364 = vsyncadd [#allocation5], %s363
      %s366 = sshll.u32 [#allocation9], 4
      %s367 = int_to_ptr.vmem [resolvable:$true] %s366
      %369 = dma.vmem_to_hbm [thread:$0]  %s367, 128, %s5, [#allocation5]
    $region45: #{tpu_custom_call.1} parent=1 // pred_fallthru
      _
    // Predicated region
    $region46: #{tpu_custom_call.1} parent=1 // pred_check
      _
    $region47: #{tpu_custom_call.1} parent=1 // pred_check_branch
      %371 = sbr.rel (0) target = $region49
    $region48: #{tpu_custom_call.1} parent=1 // pred_region
      %372 = dma.done [#allocation5], 128
    $region49: #{tpu_custom_call.1} parent=1 // pred_fallthru
      _
    %373 = vsyncpa [#allocation4], 1
    %374 = vsyncpa [#allocation7], 1
    %375 = vsyncpa [#allocation5], 1

</llo_original>
